<compile_context>
chip_gen: v6e
topology: v6e:2x2x1
jax: 0.10.0
libtpu: 0.0.40
codegen_flags: <defaults>
</compile_context>

<pallas_src>
import functools

import jax
import jax.numpy as jnp
from jax.experimental import pallas as pl
from jax.experimental.pallas import tpu as pltpu


def decoder_tcn_kernel(xp_ref, xc_ref, w_ref, b_ref, prelu_ref, alpha_ref,
                       skip_ref, o_ref, comb_ref, *,
                       kernel_size, dilation, tile_t, t_in, activation):
    # xp_ref / xc_ref : (Cin, TILE_T) bf16   previous / current x time windows
    # w_ref           : (K, Cout, Cin) bf16  w_ref[k, o, c] = W[c, o, k]
    # b_ref           : (Cout, 1) f32
    # prelu_ref/alpha_ref : (1,) f32 scalars in SMEM
    # skip_ref, o_ref : (Cout, TILE_T)
    # comb_ref        : (Cin, 2*TILE_T) bf16 VMEM scratch = [prev | cur]
    j = pl.program_id(1)
    t0 = j * tile_t
    zero = jnp.zeros((), xc_ref.dtype)

    # Stage [prev | cur] into scratch, zeroing source times outside [0, t_in).
    # This implements the virtual zero padding of the transposed conv and also
    # neutralizes the clamped / partial edge blocks loaded at the boundaries.
    pos = jax.lax.broadcasted_iota(jnp.int32, xc_ref.shape, 1)     # (Cin, TILE_T)
    src_prev = pos + (t0 - tile_t)
    comb_ref[:, :tile_t] = jnp.where(
        (src_prev >= 0) & (src_prev < t_in), xp_ref[...], zero)
    src_cur = pos + t0
    comb_ref[:, tile_t:] = jnp.where(src_cur < t_in, xc_ref[...], zero)

    # y[o, t] = sum_k sum_c x[c, t - k*d] * W[c, o, k]  + bias[o]
    # Tap k reads comb[:, TILE_T - k*d : 2*TILE_T - k*d].
    acc = jnp.dot(w_ref[0], comb_ref[:, tile_t:],
                  preferred_element_type=jnp.float32) + b_ref[...]
    for k in range(1, kernel_size):                                # static unroll
        lo = tile_t - k * dilation
        acc = acc + jnp.dot(w_ref[k], comb_ref[:, lo:lo + tile_t],
                            preferred_element_type=jnp.float32)

    if activation:
        a = prelu_ref[0]
        acc = jnp.where(acc > 0, acc, a * acc)                     # PReLU (1 param)
    acc = acc + alpha_ref[0] * skip_ref[...].astype(jnp.float32)   # + alpha * skip
    o_ref[...] = acc.astype(o_ref.dtype)


def decoder_tcn_block(x_ncw, skip_ncw, weight, bias, prelu_a, alpha,
                      kernel_size, dilation, activation=True, tile_t=512):
    """x_ncw: (B, Cin, T); skip_ncw: (B, Cout, T_out); weight: (Cin, Cout, K).
    Returns (B, Cout, T_out) with T_out = T + dilation*(K-1)."""
    B, Cin, T = x_ncw.shape
    Cin_w, Cout, K = weight.shape
    assert Cin == Cin_w and K == kernel_size
    pad = dilation * (K - 1)
    T_out = T + pad
    assert skip_ncw.shape == (B, Cout, T_out), skip_ncw.shape

    # ---- choose the time tile: multiple of 128 (lane-dense) and >= halo ----
    tile = max(int(tile_t), pad, 1)
    tile = ((tile + 127) // 128) * 128
    if tile >= T_out:
        # Single tile covering the whole output: right-pad x (tiny case only)
        # so the x block equals the full array dims.
        tile = T_out
        x_k = jnp.pad(x_ncw, ((0, 0), (0, 0), (0, T_out - T)))
    else:
        x_k = x_ncw
    nt = pl.cdiv(T_out, tile)
    nx = pl.cdiv(x_k.shape[2], tile)          # number of x time blocks

    # bf16 matmul operands; f32 everywhere else.
    x_bf = x_k.astype(jnp.bfloat16)
    w_t = jnp.transpose(weight, (2, 1, 0)).astype(jnp.bfloat16)    # (K, Cout, Cin)
    b2 = bias.reshape(Cout, 1).astype(jnp.float32)
    prelu1 = jnp.asarray(prelu_a, jnp.float32).reshape(1)
    alpha1 = jnp.asarray(alpha, jnp.float32).reshape(1)

    def xprev_map(b, j):                       # previous window (halo), clamped
        return (b, 0, jnp.maximum(jnp.minimum(j - 1, nx - 1), 0))

    def xcur_map(b, j):                        # current window, clamped
        return (b, 0, jnp.minimum(j, nx - 1))

    kern = functools.partial(decoder_tcn_kernel, kernel_size=K,
                             dilation=dilation, tile_t=tile, t_in=T,
                             activation=activation)

    out = pl.pallas_call(
        kern,
        out_shape=jax.ShapeDtypeStruct((B, Cout, T_out), skip_ncw.dtype),
        grid=(B, nt),
        in_specs=[
            pl.BlockSpec((None, Cin, tile), xprev_map),                 # x prev
            pl.BlockSpec((None, Cin, tile), xcur_map),                  # x cur
            pl.BlockSpec((K, Cout, Cin), lambda b, j: (0, 0, 0)),       # weights
            pl.BlockSpec((Cout, 1), lambda b, j: (0, 0)),               # bias
            pl.BlockSpec(memory_space=pltpu.MemorySpace.SMEM),          # prelu a
            pl.BlockSpec(memory_space=pltpu.MemorySpace.SMEM),          # alpha
            pl.BlockSpec((None, Cout, tile), lambda b, j: (b, 0, j)),   # skip
        ],
        out_specs=pl.BlockSpec((None, Cout, tile), lambda b, j: (b, 0, j)),
        scratch_shapes=[pltpu.VMEM((Cin, 2 * tile), jnp.bfloat16)],
        compiler_params=pltpu.CompilerParams(
            dimension_semantics=("parallel", "parallel")),
    )(x_bf, x_bf, w_t, b2, prelu1, alpha1, skip_ncw)

    return out


def ref_forward(x_ncw, skip_ncw, weight, bias, prelu_a, alpha, dilation):
    """Pure-JAX reference using the direct transposed-conv scatter formula."""
    B, Cin, T = x_ncw.shape
    _, Cout, K = weight.shape
    T_out = T + dilation * (K - 1)
    y = jnp.zeros((B, Cout, T_out), jnp.float32)
    for k in range(K):
        contrib = jnp.einsum('bct,co->bot', x_ncw, weight[:, :, k],
                             precision=jax.lax.Precision.HIGHEST)
        y = y.at[:, :, dilation * k:dilation * k + T].add(contrib)
    y = y + bias[None, :, None]
    y = jnp.where(y > 0, y, prelu_a * y)
    y = y + alpha * skip_ncw
    return y


if __name__ == "__main__":
    base_key = jax.random.PRNGKey(0)

    def run_case(B, Cin, Cout, K, dil, T, tile_t):
        T_out = T + dil * (K - 1)
        k1, k2, k3, k4 = jax.random.split(jax.random.fold_in(base_key, T), 4)
        x = jax.random.normal(k1, (B, Cin, T), jnp.float32)
        skip = jax.random.normal(k2, (B, Cout, T_out), jnp.float32)
        # ConvTranspose1d weight layout (Cin, Cout, K); xavier_uniform as in __init__.
        bound = (6.0 / (Cout * K + Cin * K)) ** 0.5
        weight = jax.random.uniform(k3, (Cin, Cout, K), jnp.float32, -bound, bound)
        # bias / alpha are 0 / 1 at init; use non-trivial values here so the
        # bias-add and alpha-scale paths of the forward are actually exercised.
        bias = 0.1 * jax.random.normal(k4, (Cout,), jnp.float32)
        prelu_a = jnp.float32(0.25)
        alpha = jnp.float32(0.8)

        out = decoder_tcn_block(x, skip, weight, bias, prelu_a, alpha, K, dil,
                                tile_t=tile_t)
        out = jax.block_until_ready(out)

        # Reference on the bf16-rounded operands (isolates the kernel's logic
        # from the intentional bf16 cast of x / weight).
        xq = x.astype(jnp.bfloat16).astype(jnp.float32)
        wq = weight.astype(jnp.bfloat16).astype(jnp.float32)
        ref = ref_forward(xq, skip, wq, bias, prelu_a, alpha, dil)

        assert out.shape == (B, Cout, T_out), out.shape
        err = float(jnp.max(jnp.abs(out - ref)))
        assert jnp.allclose(out, ref, atol=2e-3, rtol=2e-3), err

    # Small, single-time-tile case (toy module sizes).
    run_case(B=2, Cin=4, Cout=6, K=3, dil=2, T=16, tile_t=512)
    # Time-tiled case: 4 lane-dense tiles of 128; exercises the halo blocks,
    # the left/right boundary masking and the partial final x block (T=508).
    run_case(B=2, Cin=4, Cout=6, K=3, dil=2, T=508, tile_t=128)
    print("KERNEL_OK")
</pallas_src>

<mosaic_0001>
module attributes {stable_mosaic.version = 11 : i64} {
  func.func @decoder_tcn_kernel(%arg0: i32, %arg1: i32, %arg2: memref<1x4x20xbf16, #tpu.memory_space<vmem>>, %arg3: memref<1x4x20xbf16, #tpu.memory_space<vmem>>, %arg4: memref<3x6x4xbf16, #tpu.memory_space<vmem>>, %arg5: memref<6x1xf32, #tpu.memory_space<vmem>>, %arg6: memref<1xf32, #tpu.memory_space<smem>>, %arg7: memref<1xf32, #tpu.memory_space<smem>>, %arg8: memref<1x6x20xf32, #tpu.memory_space<vmem>>, %arg9: memref<1x6x20xf32, #tpu.memory_space<vmem>>, %arg10: memref<4x40xbf16, #tpu.memory_space<vmem>>) attributes {dimension_semantics = [#tpu.dimension_semantics<parallel>, #tpu.dimension_semantics<parallel>], iteration_bounds = array<i64: 2, 1>, scalar_prefetch = 0 : i64, scratch_operands = 1 : i64, tpu.core_type = #tpu.core_type<tc>, window_params = [{transform_indices = @transform_0, window_bounds = array<i64: 1, 4, 20>}, {transform_indices = @transform_1, window_bounds = array<i64: 1, 4, 20>}, {pipeline_mode = #tpu.pipeline_mode<synchronous>, transform_indices = @transform_2, window_bounds = array<i64: 3, 6, 4>}, {pipeline_mode = #tpu.pipeline_mode<synchronous>, transform_indices = @transform_3, window_bounds = array<i64: 6, 1>}, {transform_indices = @transform_4, window_bounds = array<i64: 1>}, {transform_indices = @transform_5, window_bounds = array<i64: 1>}, {transform_indices = @transform_6, window_bounds = array<i64: 1, 6, 20>}, {transform_indices = @transform_7, window_bounds = array<i64: 1, 6, 20>}]} {
    %c20_i32 = arith.constant 20 : i32
    %0 = arith.muli %arg1, %c20_i32 : i32
    %1 = tpu.iota {dimensions = array<i32: 1>} : vector<4x20xi32>
    %c20_i32_0 = arith.constant 20 : i32
    %2 = arith.subi %0, %c20_i32_0 : i32
    %3 = vector.broadcast %2 : i32 to vector<4x20xi32>
    %4 = arith.addi %1, %3 : vector<4x20xi32>
    %c0_i32 = arith.constant 0 : i32
    %5 = vector.broadcast %c0_i32 : i32 to vector<4x20xi32>
    %6 = arith.cmpi sge, %4, %5 : vector<4x20xi32>
    %c16_i32 = arith.constant 16 : i32
    %7 = vector.broadcast %c16_i32 : i32 to vector<4x20xi32>
    %8 = arith.cmpi slt, %4, %7 : vector<4x20xi32>
    %9 = arith.andi %6, %8 : vector<4x20xi1>
    %c0 = arith.constant 0 : index
    %c0_1 = arith.constant 0 : index
    %c0_2 = arith.constant 0 : index
    %10 = vector.load %arg2[%c0, %c0_1, %c0_2] : memref<1x4x20xbf16, #tpu.memory_space<vmem>>, vector<1x4x20xbf16>
    %11 = vector.shape_cast %10 : vector<1x4x20xbf16> to vector<4x20xbf16>
    %cst = arith.constant 0.000000e+00 : bf16
    %12 = vector.broadcast %cst : bf16 to vector<4x20xbf16>
    %13 = arith.select %9, %11, %12 : vector<4x20xi1>, vector<4x20xbf16>
    %c0_3 = arith.constant 0 : index
    %c0_4 = arith.constant 0 : index
    %14 = vector.load %arg10[%c0_3, %c0_4] : memref<4x40xbf16, #tpu.memory_space<vmem>>, vector<4x20xbf16>
    tpu.vector_store %arg10[%c0_3, %c0_4], %13 {strides = array<i32>} : memref<4x40xbf16, #tpu.memory_space<vmem>>, vector<4x20xbf16>,
    %15 = vector.broadcast %0 : i32 to vector<4x20xi32>
    %16 = arith.addi %1, %15 : vector<4x20xi32>
    %c16_i32_5 = arith.constant 16 : i32
    %17 = vector.broadcast %c16_i32_5 : i32 to vector<4x20xi32>
    %18 = arith.cmpi slt, %16, %17 : vector<4x20xi32>
    %c0_6 = arith.constant 0 : index
    %c0_7 = arith.constant 0 : index
    %c0_8 = arith.constant 0 : index
    %19 = vector.load %arg3[%c0_6, %c0_7, %c0_8] : memref<1x4x20xbf16, #tpu.memory_space<vmem>>, vector<1x4x20xbf16>
    %20 = vector.shape_cast %19 : vector<1x4x20xbf16> to vector<4x20xbf16>
    %cst_9 = arith.constant 0.000000e+00 : bf16
    %21 = vector.broadcast %cst_9 : bf16 to vector<4x20xbf16>
    %22 = arith.select %18, %20, %21 : vector<4x20xi1>, vector<4x20xbf16>
    %c0_10 = arith.constant 0 : index
    %c20 = arith.constant 20 : index
    %23 = vector.load %arg10[%c0_10, %c20] : memref<4x40xbf16, #tpu.memory_space<vmem>>, vector<4x20xbf16>
    tpu.vector_store %arg10[%c0_10, %c20], %22 {strides = array<i32>} : memref<4x40xbf16, #tpu.memory_space<vmem>>, vector<4x20xbf16>,
    %c0_11 = arith.constant 0 : index
    %c0_12 = arith.constant 0 : index
    %c0_13 = arith.constant 0 : index
    %24 = vector.load %arg4[%c0_11, %c0_12, %c0_13] : memref<3x6x4xbf16, #tpu.memory_space<vmem>>, vector<1x6x4xbf16>
    %25 = vector.shape_cast %24 : vector<1x6x4xbf16> to vector<6x4xbf16>
    %c0_14 = arith.constant 0 : index
    %c20_15 = arith.constant 20 : index
    %26 = vector.load %arg10[%c0_14, %c20_15] : memref<4x40xbf16, #tpu.memory_space<vmem>>, vector<4x20xbf16>
    %cst_16 = arith.constant dense<0.000000e+00> : vector<6x20xf32>
    %27 = tpu.matmul %25, %26, %cst_16 {dimension_numbers = #tpu.dot_dimension_numbers<[1], [0], [0], [1], [0, 0, 1, 1], [], []>} : vector<6x4xbf16>, vector<4x20xbf16>, vector<6x20xf32> -> vector<6x20xf32>
    %c0_17 = arith.constant 0 : index
    %c0_18 = arith.constant 0 : index
    %28 = vector.load %arg5[%c0_17, %c0_18] : memref<6x1xf32, #tpu.memory_space<vmem>>, vector<6x1xf32>
    %29 = vector.broadcast %28 : vector<6x1xf32> to vector<6x20xf32>
    %30 = arith.addf %27, %29 : vector<6x20xf32>
    %c1 = arith.constant 1 : index
    %c0_19 = arith.constant 0 : index
    %c0_20 = arith.constant 0 : index
    %31 = vector.load %arg4[%c1, %c0_19, %c0_20] : memref<3x6x4xbf16, #tpu.memory_space<vmem>>, vector<1x6x4xbf16>
    %32 = vector.shape_cast %31 : vector<1x6x4xbf16> to vector<6x4xbf16>
    %c0_21 = arith.constant 0 : index
    %c18 = arith.constant 18 : index
    %33 = vector.load %arg10[%c0_21, %c18] : memref<4x40xbf16, #tpu.memory_space<vmem>>, vector<4x20xbf16>
    %cst_22 = arith.constant dense<0.000000e+00> : vector<6x20xf32>
    %34 = tpu.matmul %32, %33, %cst_22 {dimension_numbers = #tpu.dot_dimension_numbers<[1], [0], [0], [1], [0, 0, 1, 1], [], []>} : vector<6x4xbf16>, vector<4x20xbf16>, vector<6x20xf32> -> vector<6x20xf32>
    %35 = arith.addf %30, %34 : vector<6x20xf32>
    %c2 = arith.constant 2 : index
    %c0_23 = arith.constant 0 : index
    %c0_24 = arith.constant 0 : index
    %36 = vector.load %arg4[%c2, %c0_23, %c0_24] : memref<3x6x4xbf16, #tpu.memory_space<vmem>>, vector<1x6x4xbf16>
    %37 = vector.shape_cast %36 : vector<1x6x4xbf16> to vector<6x4xbf16>
    %c0_25 = arith.constant 0 : index
    %c16 = arith.constant 16 : index
    %38 = vector.load %arg10[%c0_25, %c16] : memref<4x40xbf16, #tpu.memory_space<vmem>>, vector<4x20xbf16>
    %cst_26 = arith.constant dense<0.000000e+00> : vector<6x20xf32>
    %39 = tpu.matmul %37, %38, %cst_26 {dimension_numbers = #tpu.dot_dimension_numbers<[1], [0], [0], [1], [0, 0, 1, 1], [], []>} : vector<6x4xbf16>, vector<4x20xbf16>, vector<6x20xf32> -> vector<6x20xf32>
    %40 = arith.addf %35, %39 : vector<6x20xf32>
    %c0_27 = arith.constant 0 : index
    %41 = memref.load %arg6[%c0_27] : memref<1xf32, #tpu.memory_space<smem>>
    %cst_28 = arith.constant 0.000000e+00 : f32
    %42 = vector.broadcast %cst_28 : f32 to vector<6x20xf32>
    %43 = arith.cmpf ogt, %40, %42 : vector<6x20xf32>
    %44 = vector.broadcast %41 : f32 to vector<6x20xf32>
    %45 = arith.mulf %44, %40 : vector<6x20xf32>
    %46 = arith.select %43, %40, %45 : vector<6x20xi1>, vector<6x20xf32>
    %c0_29 = arith.constant 0 : index
    %47 = memref.load %arg7[%c0_29] : memref<1xf32, #tpu.memory_space<smem>>
    %c0_30 = arith.constant 0 : index
    %c0_31 = arith.constant 0 : index
    %c0_32 = arith.constant 0 : index
    %48 = vector.load %arg8[%c0_30, %c0_31, %c0_32] : memref<1x6x20xf32, #tpu.memory_space<vmem>>, vector<1x6x20xf32>
    %49 = vector.shape_cast %48 : vector<1x6x20xf32> to vector<6x20xf32>
    %50 = vector.broadcast %47 : f32 to vector<6x20xf32>
    %51 = arith.mulf %50, %49 : vector<6x20xf32>
    %52 = arith.addf %46, %51 : vector<6x20xf32>
    %c0_33 = arith.constant 0 : index
    %c0_34 = arith.constant 0 : index
    %c0_35 = arith.constant 0 : index
    %53 = vector.load %arg9[%c0_33, %c0_34, %c0_35] : memref<1x6x20xf32, #tpu.memory_space<vmem>>, vector<1x6x20xf32>
    %54 = vector.shape_cast %53 : vector<1x6x20xf32> to vector<6x20xf32>
    %55 = vector.shape_cast %52 : vector<6x20xf32> to vector<1x6x20xf32>
    tpu.vector_store %arg9[%c0_33, %c0_34, %c0_35], %55 {strides = array<i32>} : memref<1x6x20xf32, #tpu.memory_space<vmem>>, vector<1x6x20xf32>,
    return
  }
  func.func @transform_0(%arg0: i32, %arg1: i32) -> (i32, i32, i32) {
    %c1_i32 = arith.constant 1 : i32
    %0 = arith.subi %arg1, %c1_i32 : i32
    %c0_i32 = arith.constant 0 : i32
    %1 = arith.minsi %0, %c0_i32 : i32
    %c0_i32_0 = arith.constant 0 : i32
    %2 = arith.maxsi %1, %c0_i32_0 : i32
    %c0_i32_1 = arith.constant 0 : i32
    %c0_i32_2 = arith.constant 0 : i32
    return %arg0, %c0_i32_1, %2 : i32, i32, i32
  }
  func.func @transform_1(%arg0: i32, %arg1: i32) -> (i32, i32, i32) {
    %c0_i32 = arith.constant 0 : i32
    %0 = arith.minsi %arg1, %c0_i32 : i32
    %c0_i32_0 = arith.constant 0 : i32
    %c0_i32_1 = arith.constant 0 : i32
    return %arg0, %c0_i32_0, %0 : i32, i32, i32
  }
  func.func @transform_2(%arg0: i32, %arg1: i32) -> (i32, i32, i32) {
    %c0_i32 = arith.constant 0 : i32
    %c0_i32_0 = arith.constant 0 : i32
    %c0_i32_1 = arith.constant 0 : i32
    %c0_i32_2 = arith.constant 0 : i32
    return %c0_i32, %c0_i32_0, %c0_i32_1 : i32, i32, i32
  }
  func.func @transform_3(%arg0: i32, %arg1: i32) -> (i32, i32) {
    %c0_i32 = arith.constant 0 : i32
    %c0_i32_0 = arith.constant 0 : i32
    %c0_i32_1 = arith.constant 0 : i32
    return %c0_i32, %c0_i32_0 : i32, i32
  }
  func.func @transform_4(%arg0: i32, %arg1: i32) -> i32 {
    %c0_i32 = arith.constant 0 : i32
    %c0_i32_0 = arith.constant 0 : i32
    return %c0_i32 : i32
  }
  func.func @transform_5(%arg0: i32, %arg1: i32) -> i32 {
    %c0_i32 = arith.constant 0 : i32
    %c0_i32_0 = arith.constant 0 : i32
    return %c0_i32 : i32
  }
  func.func @transform_6(%arg0: i32, %arg1: i32) -> (i32, i32, i32) {
    %c0_i32 = arith.constant 0 : i32
    %c0_i32_0 = arith.constant 0 : i32
    return %arg0, %c0_i32, %arg1 : i32, i32, i32
  }
  func.func @transform_7(%arg0: i32, %arg1: i32) -> (i32, i32, i32) {
    %c0_i32 = arith.constant 0 : i32
    %c0_i32_0 = arith.constant 0 : i32
    return %arg0, %c0_i32, %arg1 : i32, i32, i32
  }
}

</mosaic_0001>

<llo_original>
// kernel: tpu_custom_call.1
$region0: #{tpu_custom_call.1}
  #allocation0 [shape = 'u32[]', space=smem, size = 0x4, offset = 0x4, fixed_abs, tag = 'smem constant byte address 0x4 - core index']
  #allocation1 [shape = 'u32[144,128]{1,0:T(1,128)}', space=vmem, size = 0x12000, scoped, tag = 'internal scratch']
  #allocation2 [shape = 'bf16[4,40]{1,0:T(4,128)(2,1)}', space=vmem, size = 0x400, scoped, tag = 'scratch operand']
  #allocation3 [shape = 'f32[1]{0:T(128)S(6)}', space=smem, size = 0x200, scoped, tag = 'scoped memory for tpu_custom_call.1']
  #allocation4 [shape = 'f32[1]{0:T(128)S(6)}', space=smem, size = 0x200, scoped, tag = 'scoped memory for tpu_custom_call.1']
  %s0 = inlined_call_operand.vmem [shape: bf16[2,4,20], index: 0, kind: input, shape index: {}]
  %s1 = inlined_call_operand.vmem [shape: bf16[2,4,20], index: 1, kind: input, shape index: {}]
  %s2 = inlined_call_operand.vmem [shape: bf16[3,6,4], index: 2, kind: input, shape index: {}]
  %s3 = inlined_call_operand.vmem [shape: f32[6,1], index: 3, kind: input, shape index: {}]
  %s4 = inlined_call_operand.<no memory space> [shape: f32[1], index: 4, kind: input, shape index: {}]
  %s5 = inlined_call_operand.<no memory space> [shape: f32[1], index: 5, kind: input, shape index: {}]
  %s6 = inlined_call_operand.vmem [shape: f32[2,6,20], index: 6, kind: input, shape index: {}]
  %s7 = inlined_call_operand.vmem [shape: f32[2,6,20], index: 7, kind: output, shape index: {}]
  %s8 = sld [smem:[#allocation0]]
  $region61: #{tpu_custom_call.1} parent=0
    _
  %s10 = ssub.s32 1, %s8
  %s11 = scalar_select 0, %s10, %s8
  %12 = sst [smem:[#allocation3]] %s4
  %13 = sst [smem:[#allocation4]] %s5
  loop: start=0, step=1, limit=4
  $region2: #{tpu_custom_call.1} parent=0 // loop_pre_header
    _
  $region3: #{tpu_custom_call.1} parent=0 // loop_header
    %s15 = sphi 0, %s19
    %p16 = scmp.ge.s32.totalorder %s15, 4
    %s22 = sphi 0, %s34
    %s23 = sphi 0, %s30
    %s24 = sphi 0, %s22
    %s25 = sphi 0, %s23
    %s26 = sphi 0, %s24
    %s27 = sphi 0, %s25
    %s49 = sphi 0, %s51
    %s52 = sphi 0, %s49
    %s53 = sphi 0, %s52
    %s69 = sphi 0, %s53
    %s81 = sphi 0, %s83
    %s84 = sphi 0, %s81
    %s85 = sphi 0, %s84
    %s101 = sphi 0, %s85
    %s105 = sphi 0, %s105
    %s107 = sphi 0, %s105
    %s108 = sphi 0, %s107
    %s122 = sphi 0, %s108
    %s126 = sphi 0, %s126
    %s128 = sphi 0, %s126
    %s129 = sphi 0, %s128
    %s143 = sphi 0, %s129
    %s147 = sphi 0, %s147
    %s149 = sphi 0, %s147
    %s150 = sphi 0, %s149
    %s164 = sphi 0, %s150
    %s168 = sphi 0, %s168
    %s170 = sphi 0, %s168
    %s171 = sphi 0, %s170
    %s185 = sphi 0, %s171
    %s193 = sphi 0, %s195
    %s196 = sphi 0, %s193
    %s197 = sphi 0, %s196
    %s213 = sphi 0, %s197
    %s221 = sphi 0, %s223
    %s224 = sphi 0, %s221
    %s225 = sphi 0, %s224
    %s241 = sphi 0, %s225
  $region4: #{tpu_custom_call.1} parent=0 // loop_header_branch
    %18 = sbr.rel (%p16) target = $region8
  $region5: #{tpu_custom_call.1} parent=0 // loop_body
    %s20 = ssub.s32 %s15, 1
    %s21 = ssub.s32 %s15, 2
    %s28 = sadd.s32 1, %s23
    %p29 = scmp.ge.s32.totalorder %s28, 1
    %s30 = scalar_select %p29, 0, %s28
    %s31 = sadd.s32 1, %s22
    %s32 = scalar_select %p29, %s31, %s22
    %p33 = scmp.ge.s32.totalorder %s32, 2
    %s34 = scalar_select %p33, 0, %s32
    %s35 = ssub.s32 %s23, 1
    %p36 = scmp.lt.s32.totalorder %s35, 0
    %s37 = scalar_select %p36, %s35, 0
    %p38 = scmp.gt.s32.totalorder %s37, 0
    %s39 = scalar_select %p38, %s37, 0
    %s40 = ssub.s32 %s30, 1
    %p41 = scmp.lt.s32.totalorder %s40, 0
    %s42 = scalar_select %p41, %s40, 0
    %p43 = scmp.gt.s32.totalorder %s42, 0
    %s44 = scalar_select %p43, %s42, 0
    %s45 = ssub.s32 %s22, %s34
    %s46 = ssub.s32 %s39, %s44
    %s47 = sor.u32 %s45, %s46
    %p48 = scmp.eq.s32.totalorder %s47, 0
    %s50 = sadd.s32 %s49, 1
    %s51 = scalar_select %p48, %s49, %s50
    %p54 = pneg %p48
    %p55 = scmp.eq.s32.totalorder %s15, 1
    %p56 = por %p54, %p55
    %p57 = scmp.ne.s32.totalorder %s49, %s52
    %p58 = scmp.eq.s32.totalorder %s15, 0
    %p59 = por %p57, %p58
    %p60 = scmp.ne.s32.totalorder %s49, %s52
    %p61 = scmp.eq.s32.totalorder %s20, 1
    %p62 = por %p60, %p61
    %p63 = scmp.ne.s32.totalorder %s52, %s53
    %p64 = scmp.eq.s32.totalorder %s20, 0
    %p65 = por %p63, %p64
    %p66 = scmp.ne.s32.totalorder %s52, %s53
    %p67 = scmp.eq.s32.totalorder %s21, 1
    %p68 = por %p66, %p67
    %p70 = scmp.ne.s32.totalorder %s53, %s69
    %p71 = scmp.eq.s32.totalorder %s21, 0
    %p72 = por %p70, %p71
    %p73 = scmp.lt.s32.totalorder %s23, 0
    %s74 = scalar_select %p73, %s23, 0
    %p75 = scmp.lt.s32.totalorder %s30, 0
    %s76 = scalar_select %p75, %s30, 0
    %s77 = ssub.s32 %s22, %s34
    %s78 = ssub.s32 %s74, %s76
    %s79 = sor.u32 %s77, %s78
    %p80 = scmp.eq.s32.totalorder %s79, 0
    %s82 = sadd.s32 %s81, 1
    %s83 = scalar_select %p80, %s81, %s82
    %p86 = pneg %p80
    %p87 = scmp.eq.s32.totalorder %s15, 1
    %p88 = por %p86, %p87
    %p89 = scmp.ne.s32.totalorder %s81, %s84
    %p90 = scmp.eq.s32.totalorder %s15, 0
    %p91 = por %p89, %p90
    %p92 = scmp.ne.s32.totalorder %s81, %s84
    %p93 = scmp.eq.s32.totalorder %s20, 1
    %p94 = por %p92, %p93
    %p95 = scmp.ne.s32.totalorder %s84, %s85
    %p96 = scmp.eq.s32.totalorder %s20, 0
    %p97 = por %p95, %p96
    %p98 = scmp.ne.s32.totalorder %s84, %s85
    %p99 = scmp.eq.s32.totalorder %s21, 1
    %p100 = por %p98, %p99
    %p102 = scmp.ne.s32.totalorder %s85, %s101
    %p103 = scmp.eq.s32.totalorder %s21, 0
    %p104 = por %p102, %p103
    %s106 = sadd.s32 %s105, 1
    %p109 = scmp.eq.s32.totalorder %s15, 1
    %p110 = scmp.ne.s32.totalorder %s105, %s107
    %p111 = scmp.eq.s32.totalorder %s15, 0
    %p112 = por %p110, %p111
    %p113 = scmp.ne.s32.totalorder %s105, %s107
    %p114 = scmp.eq.s32.totalorder %s20, 1
    %p115 = por %p113, %p114
    %p116 = scmp.ne.s32.totalorder %s107, %s108
    %p117 = scmp.eq.s32.totalorder %s20, 0
    %p118 = por %p116, %p117
    %p119 = scmp.ne.s32.totalorder %s107, %s108
    %p120 = scmp.eq.s32.totalorder %s21, 1
    %p121 = por %p119, %p120
    %p123 = scmp.ne.s32.totalorder %s108, %s122
    %p124 = scmp.eq.s32.totalorder %s21, 0
    %p125 = por %p123, %p124
    %s127 = sadd.s32 %s126, 1
    %p130 = scmp.eq.s32.totalorder %s15, 1
    %p131 = scmp.ne.s32.totalorder %s126, %s128
    %p132 = scmp.eq.s32.totalorder %s15, 0
    %p133 = por %p131, %p132
    %p134 = scmp.ne.s32.totalorder %s126, %s128
    %p135 = scmp.eq.s32.totalorder %s20, 1
    %p136 = por %p134, %p135
    %p137 = scmp.ne.s32.totalorder %s128, %s129
    %p138 = scmp.eq.s32.totalorder %s20, 0
    %p139 = por %p137, %p138
    %p140 = scmp.ne.s32.totalorder %s128, %s129
    %p141 = scmp.eq.s32.totalorder %s21, 1
    %p142 = por %p140, %p141
    %p144 = scmp.ne.s32.totalorder %s129, %s143
    %p145 = scmp.eq.s32.totalorder %s21, 0
    %p146 = por %p144, %p145
    %s148 = sadd.s32 %s147, 1
    %p151 = scmp.eq.s32.totalorder %s15, 1
    %p152 = scmp.ne.s32.totalorder %s147, %s149
    %p153 = scmp.eq.s32.totalorder %s15, 0
    %p154 = por %p152, %p153
    %p155 = scmp.ne.s32.totalorder %s147, %s149
    %p156 = scmp.eq.s32.totalorder %s20, 1
    %p157 = por %p155, %p156
    %p158 = scmp.ne.s32.totalorder %s149, %s150
    %p159 = scmp.eq.s32.totalorder %s20, 0
    %p160 = por %p158, %p159
    %p161 = scmp.ne.s32.totalorder %s149, %s150
    %p162 = scmp.eq.s32.totalorder %s21, 1
    %p163 = por %p161, %p162
    %p165 = scmp.ne.s32.totalorder %s150, %s164
    %p166 = scmp.eq.s32.totalorder %s21, 0
    %p167 = por %p165, %p166
    %s169 = sadd.s32 %s168, 1
    %p172 = scmp.eq.s32.totalorder %s15, 1
    %p173 = scmp.ne.s32.totalorder %s168, %s170
    %p174 = scmp.eq.s32.totalorder %s15, 0
    %p175 = por %p173, %p174
    %p176 = scmp.ne.s32.totalorder %s168, %s170
    %p177 = scmp.eq.s32.totalorder %s20, 1
    %p178 = por %p176, %p177
    %p179 = scmp.ne.s32.totalorder %s170, %s171
    %p180 = scmp.eq.s32.totalorder %s20, 0
    %p181 = por %p179, %p180
    %p182 = scmp.ne.s32.totalorder %s170, %s171
    %p183 = scmp.eq.s32.totalorder %s21, 1
    %p184 = por %p182, %p183
    %p186 = scmp.ne.s32.totalorder %s171, %s185
    %p187 = scmp.eq.s32.totalorder %s21, 0
    %p188 = por %p186, %p187
    %s189 = ssub.s32 %s22, %s34
    %s190 = ssub.s32 %s23, %s30
    %s191 = sor.u32 %s189, %s190
    %p192 = scmp.eq.s32.totalorder %s191, 0
    %s194 = sadd.s32 %s193, 1
    %s195 = scalar_select %p192, %s193, %s194
    %p198 = pneg %p192
    %p199 = scmp.eq.s32.totalorder %s15, 1
    %p200 = por %p198, %p199
    %p201 = scmp.ne.s32.totalorder %s193, %s196
    %p202 = scmp.eq.s32.totalorder %s15, 0
    %p203 = por %p201, %p202
    %p204 = scmp.ne.s32.totalorder %s193, %s196
    %p205 = scmp.eq.s32.totalorder %s20, 1
    %p206 = por %p204, %p205
    %p207 = scmp.ne.s32.totalorder %s196, %s197
    %p208 = scmp.eq.s32.totalorder %s20, 0
    %p209 = por %p207, %p208
    %p210 = scmp.ne.s32.totalorder %s196, %s197
    %p211 = scmp.eq.s32.totalorder %s21, 1
    %p212 = por %p210, %p211
    %p214 = scmp.ne.s32.totalorder %s197, %s213
    %p215 = scmp.eq.s32.totalorder %s21, 0
    %p216 = por %p214, %p215
    %s217 = ssub.s32 %s22, %s34
    %s218 = ssub.s32 %s23, %s30
    %s219 = sor.u32 %s217, %s218
    %p220 = scmp.eq.s32.totalorder %s219, 0
    %s222 = sadd.s32 %s221, 1
    %s223 = scalar_select %p220, %s221, %s222
    %p226 = pneg %p220
    %p227 = scmp.eq.s32.totalorder %s15, 1
    %p228 = por %p226, %p227
    %p229 = scmp.ne.s32.totalorder %s221, %s224
    %p230 = scmp.eq.s32.totalorder %s15, 0
    %p231 = por %p229, %p230
    %p232 = scmp.ne.s32.totalorder %s221, %s224
    %p233 = scmp.eq.s32.totalorder %s20, 1
    %p234 = por %p232, %p233
    %p235 = scmp.ne.s32.totalorder %s224, %s225
    %p236 = scmp.eq.s32.totalorder %s20, 0
    %p237 = por %p235, %p236
    %p238 = scmp.ne.s32.totalorder %s224, %s225
    %p239 = scmp.eq.s32.totalorder %s21, 1
    %p240 = por %p238, %p239
    %p242 = scmp.ne.s32.totalorder %s225, %s241
    %p243 = scmp.eq.s32.totalorder %s21, 0
    %p244 = por %p242, %p243
    %p245 = scmp.le.s32.totalorder 1, %s15
    %p246 = scmp.lt.s32.totalorder %s15, 3
    %p247 = pnand %p245, %p246
    %p248 = pneg %p247
    // Predicated region
    $region9: #{tpu_custom_call.1} parent=5 // pred_check
      _
    $region10: #{tpu_custom_call.1} parent=5 // pred_check_branch
      %250 = sbr.rel (%p247) target = $region12
    $region11: #{tpu_custom_call.1} parent=5 // pred_region
      %s251 = ssub.s32 %s15, 1
      // Predicated region
      $region13: #{tpu_custom_call.1} parent=11 // pred_check
        %p252 = pneg %p118
      $region14: #{tpu_custom_call.1} parent=11 // pred_check_branch
        %254 = sbr.rel (%p252) target = $region16
      $region15: #{tpu_custom_call.1} parent=11 // pred_region
        _
      $region16: #{tpu_custom_call.1} parent=11 // pred_fallthru
        _
      // Predicated region
      $region17: #{tpu_custom_call.1} parent=11 // pred_check
        %p255 = pneg %p139
      $region18: #{tpu_custom_call.1} parent=11 // pred_check_branch
        %257 = sbr.rel (%p255) target = $region20
      $region19: #{tpu_custom_call.1} parent=11 // pred_region
        _
      $region20: #{tpu_custom_call.1} parent=11 // pred_fallthru
        _
      // Predicated region
      $region21: #{tpu_custom_call.1} parent=11 // pred_check
        %p258 = pneg %p160
      $region22: #{tpu_custom_call.1} parent=11 // pred_check_branch
        %260 = sbr.rel (%p258) target = $region24
      $region23: #{tpu_custom_call.1} parent=11 // pred_region
        _
      $region24: #{tpu_custom_call.1} parent=11 // pred_fallthru
        _
      // Predicated region
      $region25: #{tpu_custom_call.1} parent=11 // pred_check
        %p261 = pneg %p181
      $region26: #{tpu_custom_call.1} parent=11 // pred_check_branch
        %263 = sbr.rel (%p261) target = $region28
      $region27: #{tpu_custom_call.1} parent=11 // pred_region
        _
      $region28: #{tpu_custom_call.1} parent=11 // pred_fallthru
        _
    $region12: #{tpu_custom_call.1} parent=5 // pred_fallthru
      _
    %p264 = scmp.lt.s32.totalorder %s15, 2
    // Predicated region
    $region29: #{tpu_custom_call.1} parent=5 // pred_check
      %p265 = pneg %p264
    $region30: #{tpu_custom_call.1} parent=5 // pred_check_branch
      %267 = sbr.rel (%p265) target = $region32
    $region31: #{tpu_custom_call.1} parent=5 // pred_region
      // Predicated region
      $region33: #{tpu_custom_call.1} parent=31 // pred_check
        %p268 = pneg %p59
      $region34: #{tpu_custom_call.1} parent=31 // pred_check_branch
        %270 = sbr.rel (%p268) target = $region36
      $region35: #{tpu_custom_call.1} parent=31 // pred_region
        %s271 = ssub.s32 %s23, 1
        %p272 = scmp.lt.s32.totalorder %s271, 0
        %s273 = scalar_select %p272, %s271, 0
        %p274 = scmp.gt.s32.totalorder %s273, 0
        %s275 = scalar_select %p274, %s273, 0
        %p276 = scmp.lt.s32.totalorder %s22, 1
        %s277 = scalar_select %p276, %s22, 1
        %p278 = scmp.lt.s32.totalorder %s275, 0
        %s279 = scalar_select %p278, %s275, 0
        %s280 = sadd.s32 %s279, %s277
        %s281 = smul.addr %s280, 2
        %s282 = scalar_lea.vmem %s0, %s281
        %s283 = ssub.s32 %s23, 1
        %p284 = scmp.lt.s32.totalorder %s283, 0
        %s285 = scalar_select %p284, %s283, 0
        %p286 = scmp.gt.s32.totalorder %s285, 0
        %s287 = scalar_select %p286, %s285, 0
      $region36: #{tpu_custom_call.1} parent=31 // pred_fallthru
        _
      // Predicated region
      $region37: #{tpu_custom_call.1} parent=31 // pred_check
        %p288 = pneg %p91
      $region38: #{tpu_custom_call.1} parent=31 // pred_check_branch
        %290 = sbr.rel (%p288) target = $region40
      $region39: #{tpu_custom_call.1} parent=31 // pred_region
        %p291 = scmp.lt.s32.totalorder %s23, 0
        %s292 = scalar_select %p291, %s23, 0
        %p293 = scmp.lt.s32.totalorder %s22, 1
        %s294 = scalar_select %p293, %s22, 1
        %p295 = scmp.lt.s32.totalorder %s292, 0
        %s296 = scalar_select %p295, %s292, 0
        %s297 = sadd.s32 %s296, %s294
        %s298 = smul.addr %s297, 2
        %s299 = scalar_lea.vmem %s1, %s298
        %p300 = scmp.lt.s32.totalorder %s23, 0
        %s301 = scalar_select %p300, %s23, 0
      $region40: #{tpu_custom_call.1} parent=31 // pred_fallthru
        _
      // Predicated region
      $region41: #{tpu_custom_call.1} parent=31 // pred_check
        %p302 = pneg %p203
      $region42: #{tpu_custom_call.1} parent=31 // pred_check_branch
        %304 = sbr.rel (%p302) target = $region44
      $region43: #{tpu_custom_call.1} parent=31 // pred_region
        %p305 = scmp.lt.s32.totalorder %s22, 1
        %s306 = scalar_select %p305, %s22, 1
        %p307 = scmp.lt.s32.totalorder %s23, 0
        %s308 = scalar_select %p307, %s23, 0
        %s309 = sadd.s32 %s308, %s306
        %s310 = smul.addr %s309, 8
        %s311 = scalar_lea.vmem %s6, %s310
      $region44: #{tpu_custom_call.1} parent=31 // pred_fallthru
        _
    $region32: #{tpu_custom_call.1} parent=5 // pred_fallthru
      _
    %p312 = scmp.le.s32.totalorder 1, %s15
    %p313 = scmp.lt.s32.totalorder %s15, 3
    %p314 = pnand %p312, %p313
    %p315 = pneg %p314
    // Predicated region
    $region45: #{tpu_custom_call.1} parent=5 // pred_check
      _
    $region46: #{tpu_custom_call.1} parent=5 // pred_check_branch
      %317 = sbr.rel (%p314) target = $region48
    $region47: #{tpu_custom_call.1} parent=5 // pred_region
      %s318 = ssub.s32 %s15, 1
      %s319 = ssub.s32 %s25, 1
      %p320 = scmp.lt.s32.totalorder %s319, 0
      %s321 = scalar_select %p320, %s319, 0
      %p322 = scmp.gt.s32.totalorder %s321, 0
      %s323 = scalar_select %p322, %s321, 0
      %p324 = scmp.lt.s32.totalorder %s24, 1
      %s325 = scalar_select %p324, %s24, 1
      %p326 = scmp.lt.s32.totalorder %s323, 0
      %s327 = scalar_select %p326, %s323, 0
      %s328 = sadd.s32 %s327, %s325
      %s329 = smul.addr %s328, 2
      %s330 = scalar_lea.vmem %s0, %s329
      %p331 = pneg %p65
      %p332 = pneg %p62
      %p333 = scmp.lt.s32.totalorder %s25, 0
      %s334 = scalar_select %p333, %s25, 0
      %p335 = scmp.lt.s32.totalorder %s24, 1
      %s336 = scalar_select %p335, %s24, 1
      %p337 = scmp.lt.s32.totalorder %s334, 0
      %s338 = scalar_select %p337, %s334, 0
      %s339 = sadd.s32 %s338, %s336
      %s340 = smul.addr %s339, 2
      %s341 = scalar_lea.vmem %s1, %s340
      %p342 = pneg %p97
      %p343 = pneg %p94
      %p344 = pneg %p118
      %p345 = pneg %p115
      %p346 = pneg %p139
      %p347 = pneg %p136
      %p348 = pneg %p160
      %p349 = pneg %p157
      %p350 = pneg %p181
      %p351 = pneg %p178
      %p352 = scmp.lt.s32.totalorder %s24, 1
      %s353 = scalar_select %p352, %s24, 1
      %p354 = scmp.lt.s32.totalorder %s25, 0
      %s355 = scalar_select %p354, %s25, 0
      %s356 = sadd.s32 %s355, %s353
      %s357 = smul.addr %s356, 8
      %s358 = scalar_lea.vmem %s6, %s357
      %p359 = pneg %p209
      %p360 = pneg %p206
      %p361 = pneg %p237
      %p362 = pneg %p234
      %p363 = scmp.lt.s32.totalorder %s24, 1
      %s364 = scalar_select %p363, %s24, 1
      %p365 = scmp.lt.s32.totalorder %s25, 0
      %s366 = scalar_select %p365, %s25, 0
      %s367 = sadd.s32 %s366, %s364
      %s368 = smul.addr %s367, 8
      %s369 = scalar_lea.vmem %s7, %s368
      %s370 = ssub.s32 %s25, 1
      %p371 = scmp.lt.s32.totalorder %s370, 0
      %s372 = scalar_select %p371, %s370, 0
      %p373 = scmp.gt.s32.totalorder %s372, 0
      %s374 = scalar_select %p373, %s372, 0
      %p375 = scmp.lt.s32.totalorder %s24, 1
      %s376 = scalar_select %p375, %s24, 1
      %p377 = scmp.lt.s32.totalorder %s374, 0
      %s378 = scalar_select %p377, %s374, 0
      %s379 = sadd.s32 %s378, %s376
      %s380 = smul.addr %s379, 2
      %s381 = scalar_lea.vmem %s0, %s380
      %s382 = ssub.s32 %s25, 1
      %p383 = scmp.lt.s32.totalorder %s382, 0
      %s384 = scalar_select %p383, %s382, 0
      %p385 = scmp.gt.s32.totalorder %s384, 0
      %s386 = scalar_select %p385, %s384, 0
      %p387 = scmp.lt.s32.totalorder %s25, 0
      %s388 = scalar_select %p387, %s25, 0
      %p389 = scmp.lt.s32.totalorder %s24, 1
      %s390 = scalar_select %p389, %s24, 1
      %p391 = scmp.lt.s32.totalorder %s388, 0
      %s392 = scalar_select %p391, %s388, 0
      %s393 = sadd.s32 %s392, %s390
      %s394 = smul.addr %s393, 2
      %s395 = scalar_lea.vmem %s1, %s394
      %p396 = scmp.lt.s32.totalorder %s25, 0
      %s397 = scalar_select %p396, %s25, 0
      %p398 = scmp.lt.s32.totalorder %s24, 1
      %s399 = scalar_select %p398, %s24, 1
      %p400 = scmp.lt.s32.totalorder %s25, 0
      %s401 = scalar_select %p400, %s25, 0
      %s402 = sadd.s32 %s401, %s399
      %s403 = smul.addr %s402, 8
      %s404 = scalar_lea.vmem %s6, %s403
      %p405 = scmp.lt.s32.totalorder %s24, 1
      %s406 = scalar_select %p405, %s24, 1
      %p407 = scmp.lt.s32.totalorder %s25, 0
      %s408 = scalar_select %p407, %s25, 0
      %s409 = sadd.s32 %s408, %s406
      %s410 = smul.addr %s409, 8
      %s411 = scalar_lea.vmem %s7, %s410
      %s414 = smul.u32 %s25, 20
      %v415 = vlaneseq
      %v416 = vand.u32 %v415, 127
      %s417 = ssub.s32 %s414, 20
      %v418 = vstv %s417
      %v419 = vadd.s32 %v416, %v418
      %vm420 = vcmp.ge.s32.totalorder %v419, 0
      %vm421 = vcmp.lt.s32.totalorder %v419, 16
      %vm422 = vmand %vm420, %vm421
      %v423 = vld [vmem:[%s381] sm:$0x3]
      %v424 = vsel %vm422, 1, 0
      %v425 = vpack.c.b16 %v424, %v424
      %vm426 = vcmp.ne.s16.totalorder %v425, 0
      %v427 = vsel %vm426, %v423, 0
      %vm428 = vcmask 156672
      %429 = vst.msk [vmem:[#allocation2] sm:$0x3] %vm428, %v427
      %v430 = vstv %s414
      %v431 = vadd.s32 %v416, %v430
      %vm432 = vcmp.lt.s32.totalorder %v431, 16
      %v433 = vld [vmem:[%s395] sm:$0x3]
      %v434 = vsel %vm432, 1, 0
      %v435 = vpack.c.b16 %v434, %v434
      %vm436 = vcmp.ne.s16.totalorder %v435, 0
      %v437 = vsel %vm436, %v433, 0
      %439 = vrot.lane.b32.xlu0 %v437, 20
      %v440 = vpop.permute.xlu0 %439
      %vm442 = vcmask 320672
      %443 = vst.msk [vmem:[#allocation2] sm:$0x3] %vm442, %v440
      %v444 = vld [vmem:[%s2] sm:$0x7]
      %v445 = vld [vmem:[#allocation2] sm:$0x3]
      %v446 = vld [vmem:[%s3] sm:$0x3f]
      %448 = vset.pattern.permute.xlu0 0
      %449 = vperm.xlu0 %448, %v446
      %v450 = vpop.permute.xlu0 %449
      %v454 = vunpack.c.l.s4 1983009808
      %v455 = vunpack.c.0.s8 %v454
      %v456 = vlaneseq
      %v457 = vshrl.u32 %v456, 7
      %v458 = vsub.s32 %v455, %v457
      %v459 = vrot.slane %v445, %v458
      %460 = vrot.lane.b32.xlu0 %v459, 108
      %v461 = vpop.permute.xlu0 %460
      %vm462 = vcmask 31744
      %v464 = vsel %vm462, %v444, 0
      %vm466 = vcmask 1041408
      %v468 = vsel %vm466, %v461, 0
      %470 = vmatprep.subr.bf16.mxu0 0
      %471 = vmatpush1.bf16.msra.mxu0 0
      %472 = vmatprep.subr.bf16.mxu0 0
      %473 = vmatpush1.bf16.msra.mxu0 0
      %474 = vmatprep.subr.bf16.mxu0 0
      %475 = vmatpush1.bf16.msra.mxu0 0
      %476 = vmatprep.subr.bf16.mxu0 0
      %477 = vmatpush1.bf16.msra.mxu0 0
      %478 = vmatprep.subr.bf16.mxu0 0
      %479 = vmatpush1.bf16.msra.mxu0 0
      %480 = vmatprep.subr.bf16.mxu0 0
      %481 = vmatpush1.bf16.msra.mxu0 0
      %482 = vmatprep.subr.bf16.mxu0 0
      %483 = vmatpush1.bf16.msra.mxu0 0
      %484 = vmatprep.subr.bf16.mxu0 0
      %485 = vmatpush1.bf16.msra.mxu0 %v468
      %486 = vmatprep.subr.bf16.mxu0 0
      %487 = vmatpush2.bf16.msra.mxu0 0
      %488 = vmatprep.subr.bf16.mxu0 0
      %489 = vmatpush2.bf16.msra.mxu0 0
      %490 = vmatprep.subr.bf16.mxu0 0
      %491 = vmatpush2.bf16.msra.mxu0 0
      %492 = vmatprep.subr.bf16.mxu0 0
      %493 = vmatpush2.bf16.msra.mxu0 0
      %494 = vmatprep.subr.bf16.mxu0 0
      %495 = vmatpush2.bf16.msra.mxu0 0
      %496 = vmatprep.subr.bf16.mxu0 0
      %497 = vmatpush2.bf16.msra.mxu0 0
      %498 = vmatprep.subr.bf16.mxu0 0
      %499 = vmatpush2.bf16.msra.mxu0 0
      %500 = vmatprep.subr.bf16.mxu0 0
      %501 = vmatpush2.bf16.msra.mxu0 0
      %502 = vmatprep.mubr.bf16.mxu0 0
      %503 = vmatmul.mubr.bf16.gmra.mxu0 %v464
      %v504 = vpop.f32.mrf.mxu0
      %v505 = vadd.f32 %v450, %v504
      %v506 = vpop.f32.mrf.mxu0
      %v507 = vpop.f32.mrf.mxu0
      %v508 = vpop.f32.mrf.mxu0
      %509 = vdwg.mxu0
      %s510 = scalar_lea.vmem %s2, 4
      %v511 = vld [vmem:[%s510] sm:$0x7]
      %v512 = vld [vmem:[#allocation2] sm:$0x3]
      %v515 = vunpack.c.l.s4 1983009808
      %v516 = vunpack.c.0.s8 %v515
      %v517 = vlaneseq
      %v518 = vshrl.u32 %v517, 7
      %v519 = vsub.s32 %v516, %v518
      %v520 = vrot.slane %v512, %v519
      %521 = vrot.lane.b32.xlu0 %v520, 110
      %v522 = vpop.permute.xlu0 %521
      %v524 = vsel %vm462, %v511, 0
      %v527 = vsel %vm466, %v522, 0
      %529 = vmatprep.subr.bf16.mxu0 0
      %530 = vmatpush1.bf16.msra.mxu0 0
      %531 = vmatprep.subr.bf16.mxu0 0
      %532 = vmatpush1.bf16.msra.mxu0 0
      %533 = vmatprep.subr.bf16.mxu0 0
      %534 = vmatpush1.bf16.msra.mxu0 0
      %535 = vmatprep.subr.bf16.mxu0 0
      %536 = vmatpush1.bf16.msra.mxu0 0
      %537 = vmatprep.subr.bf16.mxu0 0
      %538 = vmatpush1.bf16.msra.mxu0 0
      %539 = vmatprep.subr.bf16.mxu0 0
      %540 = vmatpush1.bf16.msra.mxu0 0
      %541 = vmatprep.subr.bf16.mxu0 0
      %542 = vmatpush1.bf16.msra.mxu0 0
      %543 = vmatprep.subr.bf16.mxu0 0
      %544 = vmatpush1.bf16.msra.mxu0 %v527
      %545 = vmatprep.subr.bf16.mxu0 0
      %546 = vmatpush2.bf16.msra.mxu0 0
      %547 = vmatprep.subr.bf16.mxu0 0
      %548 = vmatpush2.bf16.msra.mxu0 0
      %549 = vmatprep.subr.bf16.mxu0 0
      %550 = vmatpush2.bf16.msra.mxu0 0
      %551 = vmatprep.subr.bf16.mxu0 0
      %552 = vmatpush2.bf16.msra.mxu0 0
      %553 = vmatprep.subr.bf16.mxu0 0
      %554 = vmatpush2.bf16.msra.mxu0 0
      %555 = vmatprep.subr.bf16.mxu0 0
      %556 = vmatpush2.bf16.msra.mxu0 0
      %557 = vmatprep.subr.bf16.mxu0 0
      %558 = vmatpush2.bf16.msra.mxu0 0
      %559 = vmatprep.subr.bf16.mxu0 0
      %560 = vmatpush2.bf16.msra.mxu0 0
      %561 = vmatprep.mubr.bf16.mxu0 0
      %562 = vmatmul.mubr.bf16.gmra.mxu0 %v524
      %v563 = vpop.f32.mrf.mxu0
      %v564 = vadd.f32 0.0, %v563
      %v565 = vpop.f32.mrf.mxu0
      %v566 = vpop.f32.mrf.mxu0
      %v567 = vpop.f32.mrf.mxu0
      %568 = vdwg.mxu0
      %v569 = vadd.f32 %v505, %v564
      %s570 = scalar_lea.vmem %s2, 8
      %v571 = vld [vmem:[%s570] sm:$0x7]
      %v572 = vld [vmem:[#allocation2] sm:$0x3]
      %v575 = vunpack.c.l.s4 1983009808
      %v576 = vunpack.c.0.s8 %v575
      %v577 = vlaneseq
      %v578 = vshrl.u32 %v577, 7
      %v579 = vsub.s32 %v576, %v578
      %v580 = vrot.slane %v572, %v579
      %581 = vrot.lane.b32.xlu0 %v580, 112
      %v582 = vpop.permute.xlu0 %581
      %v584 = vsel %vm462, %v571, 0
      %v587 = vsel %vm466, %v582, 0
      %589 = vmatprep.subr.bf16.mxu0 0
      %590 = vmatpush1.bf16.msra.mxu0 0
      %591 = vmatprep.subr.bf16.mxu0 0
      %592 = vmatpush1.bf16.msra.mxu0 0
      %593 = vmatprep.subr.bf16.mxu0 0
      %594 = vmatpush1.bf16.msra.mxu0 0
      %595 = vmatprep.subr.bf16.mxu0 0
      %596 = vmatpush1.bf16.msra.mxu0 0
      %597 = vmatprep.subr.bf16.mxu0 0
      %598 = vmatpush1.bf16.msra.mxu0 0
      %599 = vmatprep.subr.bf16.mxu0 0
      %600 = vmatpush1.bf16.msra.mxu0 0
      %601 = vmatprep.subr.bf16.mxu0 0
      %602 = vmatpush1.bf16.msra.mxu0 0
      %603 = vmatprep.subr.bf16.mxu0 0
      %604 = vmatpush1.bf16.msra.mxu0 %v587
      %605 = vmatprep.subr.bf16.mxu0 0
      %606 = vmatpush2.bf16.msra.mxu0 0
      %607 = vmatprep.subr.bf16.mxu0 0
      %608 = vmatpush2.bf16.msra.mxu0 0
      %609 = vmatprep.subr.bf16.mxu0 0
      %610 = vmatpush2.bf16.msra.mxu0 0
      %611 = vmatprep.subr.bf16.mxu0 0
      %612 = vmatpush2.bf16.msra.mxu0 0
      %613 = vmatprep.subr.bf16.mxu0 0
      %614 = vmatpush2.bf16.msra.mxu0 0
      %615 = vmatprep.subr.bf16.mxu0 0
      %616 = vmatpush2.bf16.msra.mxu0 0
      %617 = vmatprep.subr.bf16.mxu0 0
      %618 = vmatpush2.bf16.msra.mxu0 0
      %619 = vmatprep.subr.bf16.mxu0 0
      %620 = vmatpush2.bf16.msra.mxu0 0
      %621 = vmatprep.mubr.bf16.mxu0 0
      %622 = vmatmul.mubr.bf16.gmra.mxu0 %v584
      %v623 = vpop.f32.mrf.mxu0
      %v624 = vadd.f32 0.0, %v623
      %v625 = vpop.f32.mrf.mxu0
      %v626 = vpop.f32.mrf.mxu0
      %v627 = vpop.f32.mrf.mxu0
      %628 = vdwg.mxu0
      %v629 = vadd.f32 %v569, %v624
      %s630 = sld [smem:[#allocation3]]
      %vm631 = vcmp.gt.f32.partialorder %v629, 0.0
      %v632 = vstv %s630
      %v633 = vmul.f32 %v632, %v629
      %v634 = vsel %vm631, %v629, %v633
      %s635 = sld [smem:[#allocation4]]
      %v636 = vld [vmem:[%s404] sm:$0x3f]
      %v637 = vstv %s635
      %v638 = vmul.f32 %v637, %v636
      %v639 = vadd.f32 %v634, %v638
      %vm640 = vcmask 160768
      %641 = vst.msk [vmem:[%s411] sm:$0x3f] %vm640, %v639
      %p642 = scmp.lt.s32.totalorder %s24, 1
      %s643 = scalar_select %p642, %s24, 1
      %p644 = scmp.lt.s32.totalorder %s25, 0
      %s645 = scalar_select %p644, %s25, 0
      %s646 = sadd.s32 %s645, %s643
      %s647 = smul.addr %s646, 8
      %s648 = scalar_lea.vmem %s7, %s647
      // Predicated region
      $region49: #{tpu_custom_call.1} parent=47 // pred_check
        %p649 = pneg %p234
      $region50: #{tpu_custom_call.1} parent=47 // pred_check_branch
        %651 = sbr.rel (%p649) target = $region52
      $region51: #{tpu_custom_call.1} parent=47 // pred_region
        _
      $region52: #{tpu_custom_call.1} parent=47 // pred_fallthru
        _
    $region48: #{tpu_custom_call.1} parent=5 // pred_fallthru
      _
    %p652 = scmp.le.s32.totalorder 2, %s15
    // Predicated region
    $region53: #{tpu_custom_call.1} parent=5 // pred_check
      %p653 = pneg %p652
    $region54: #{tpu_custom_call.1} parent=5 // pred_check_branch
      %655 = sbr.rel (%p653) target = $region56
    $region55: #{tpu_custom_call.1} parent=5 // pred_region
      %s656 = ssub.s32 %s15, 2
      // Predicated region
      $region57: #{tpu_custom_call.1} parent=55 // pred_check
        %p657 = pneg %p240
      $region58: #{tpu_custom_call.1} parent=55 // pred_check_branch
        %659 = sbr.rel (%p657) target = $region60
      $region59: #{tpu_custom_call.1} parent=55 // pred_region
        %p660 = scmp.lt.s32.totalorder %s26, 1
        %s661 = scalar_select %p660, %s26, 1
        %p662 = scmp.lt.s32.totalorder %s27, 0
        %s663 = scalar_select %p662, %s27, 0
        %s664 = sadd.s32 %s663, %s661
        %s665 = smul.addr %s664, 8
        %s666 = scalar_lea.vmem %s7, %s665
      $region60: #{tpu_custom_call.1} parent=55 // pred_fallthru
        _
    $region56: #{tpu_custom_call.1} parent=5 // pred_fallthru
      _
  $region6: #{tpu_custom_call.1} parent=0 // loop_footer
    %s19 = sadd.s32 1, %s15
  $region7: #{tpu_custom_call.1} parent=0 // loop_footer_branch
    %14 = sbr.rel target = $region3
  $region8: #{tpu_custom_call.1} parent=0 // loop_exit
    _

</llo_original>
